<compile_context>
chip_gen: v7x
topology: tpu7x:2x2x1
jax: 0.10.0
libtpu: 0.0.40
codegen_flags: <defaults>
</compile_context>

<pallas_src>
import jax
import jax.numpy as jnp
from jax import lax
from jax.experimental import pallas as pl
from jax.experimental.pallas import tpu as pltpu

BN_EPS = 1e-4
LANE = 128


def _round_up(x, m):
    return (x + m - 1) // m * m


# ----------------------------------------------------------------------------
# Kernel 1: fused BatchNorm (pre-folded scale/shift) + BinActive + pad(-1)
# ----------------------------------------------------------------------------
def _make_bn_binact_pad_kernel(pad, H, W):
    def kernel(x_ref, scale_ref, shift_ref, o_ref):
        # Affine-folded BN in f32 registers (no f32 copy of x in HBM).
        y = x_ref[...].astype(jnp.float32) * scale_ref[...] + shift_ref[...]
        # clamp(0,1).round()*2-1  ==  +1 iff y > 0.5 else -1 (exact 0.5 ties
        # map to -1 via round-half-to-even) -- one compare + select.
        b = jnp.where(y > 0.5, 1.0, -1.0).astype(o_ref.dtype)
        if pad == 0:
            o_ref[...] = b
        else:
            # Fill the whole padded tile with -1, then overwrite the interior.
            o_ref[...] = jnp.full(o_ref.shape, -1.0, o_ref.dtype)
            o_ref[0, pad:pad + H, pad:pad + W, :] = b[0]
    return kernel


def bn_binact_pad(x_nhwc, gamma, beta, padding):
    """BatchNorm2d (batch stats, biased var) + binarize + ConstantPad2d(-1).

    Returns the (-1)-padded activation (N, H+2p, W+2p, C) in bf16 (+-1 exact).
    """
    N, H, W, C = x_nhwc.shape
    Hp, Wp = H + 2 * padding, W + 2 * padding

    # Cheap per-channel reductions in XLA with f32 accumulation directly on
    # the original-dtype array (no full-size f32 temp in HBM).
    mean = jnp.mean(x_nhwc, axis=(0, 1, 2), dtype=jnp.float32)
    var = jnp.var(x_nhwc, axis=(0, 1, 2), dtype=jnp.float32)   # biased
    scale = gamma.astype(jnp.float32) * lax.rsqrt(var + BN_EPS)
    shift = beta.astype(jnp.float32) - mean * scale
    scale4 = scale.reshape(1, 1, 1, C)
    shift4 = shift.reshape(1, 1, 1, C)

    # One padded image per grid step.  (For very large spatial maps this
    # kernel would additionally want row tiling; the heavy VMEM consumer --
    # the conv -- is row-tiled below.)
    cpad = _round_up(C, LANE)
    est = (2 * H * _round_up(W, 8) * cpad * x_nhwc.dtype.itemsize   # x  (x2 buf)
           + 2 * Hp * _round_up(Wp, 8) * cpad * 2                   # out (x2 buf)
           + 2 * H * _round_up(W, 8) * cpad * 4)                    # f32 temps
    vmem_limit = int(min(max(est * 1.4, 32 * 2**20), 100 * 2**20))

    kernel = _make_bn_binact_pad_kernel(padding, H, W)

    out = pl.pallas_call(
        kernel,
        out_shape=jax.ShapeDtypeStruct((N, Hp, Wp, C), jnp.bfloat16),
        grid=(N,),
        in_specs=[
            pl.BlockSpec((1, H, W, C), lambda n: (n, 0, 0, 0)),
            pl.BlockSpec((1, 1, 1, C), lambda n: (0, 0, 0, 0)),
            pl.BlockSpec((1, 1, 1, C), lambda n: (0, 0, 0, 0)),
        ],
        out_specs=pl.BlockSpec((1, Hp, Wp, C), lambda n: (n, 0, 0, 0)),
        compiler_params=pltpu.CompilerParams(
            dimension_semantics=("parallel",),
            vmem_limit_bytes=vmem_limit),
    )(x_nhwc, scale4, shift4)
    return out


# ----------------------------------------------------------------------------
# Kernel 2: convolution, in-VMEM shifted-window matmuls, row-tiled output
# ----------------------------------------------------------------------------
def _make_conv_kernel(KH, KW, OH, OW, stride, t_oh):
    t_ih = (t_oh - 1) * stride + KH            # input rows needed per out tile
    w_span = (OW - 1) * stride + 1
    row_step = t_oh * stride

    def kernel(x_ref, w_ref, o_ref, acc_ref):
        r = pl.program_id(2)                    # output-row tile (parallel)
        row0 = r * row_step
        if row_step % 8 == 0:
            row0 = pl.multiple_of(row0, 8)
        C = x_ref.shape[3]

        # Row slab for this output tile; the full padded image block is
        # resident in VMEM (index map ignores r and j), so this is a cheap
        # major-dim slice.
        x = x_ref[0, pl.ds(row0, t_ih), :, :]   # (t_ih, Wp, C) bf16

        first = True
        for kw in range(KW):
            # Hoist the W (sublane) shift out of the kh loop: KW relayouts per
            # step instead of KH*KW.
            if stride == 1:
                xw = x[:, kw:kw + OW, :]                       # (t_ih, OW, C)
            else:
                xw = lax.slice(x, (0, kw, 0), (t_ih, kw + w_span, C),
                               (1, stride, 1))
            for kh in range(KH):
                if stride == 1:
                    a = xw[kh:kh + t_oh, :, :]                 # (t_oh, OW, C)
                else:
                    a = lax.slice(xw, (kh, 0, 0),
                                  (kh + (t_oh - 1) * stride + 1, OW, C),
                                  (stride, 1, 1))
                a2 = a.reshape(t_oh * OW, C)
                # Accumulate each tap directly into the f32 scratch (MRB
                # in-place accumulate on v7x; no KH*KW live temporaries).
                contrib = jnp.dot(a2, w_ref[kh, kw],
                                  preferred_element_type=jnp.float32)
                if first:
                    acc_ref[...] = contrib
                    first = False
                else:
                    acc_ref[...] += contrib

        o_ref[...] = acc_ref[...].reshape(o_ref.shape).astype(o_ref.dtype)

    return kernel


def _pick_t_oh(OH, OW, tn):
    """Largest divisor of OH keeping the f32 accumulator modest in VMEM."""
    best = 1
    for d in range(1, OH + 1):
        if OH % d:
            continue
        rows = d * OW
        if rows <= 4096 and rows * tn * 4 <= (2 << 20):
            best = d
    return best


def conv2d_pallas(xp, weight, *, stride, out_dtype=jnp.float32):
    """xp: (N, Hp, Wp, C) bf16 (-1)-padded activation; weight: (OC, C, KH, KW)."""
    N, Hp, Wp, C = xp.shape
    OC, IC, KH, KW = weight.shape
    assert IC == C
    OH = (Hp - KH) // stride + 1
    OW = (Wp - KW) // stride + 1

    # Lane-dense output channels: pad OC up to a multiple of 128; wide OC
    # tiles (up to 512) keep the whole weight resident for common layer sizes.
    OCp = _round_up(OC, LANE)
    if OCp <= 512:
        tn = OCp
    elif OCp % 512 == 0:
        tn = 512
    elif OCp % 256 == 0:
        tn = 256
    else:
        tn = LANE
    J = OCp // tn

    # Spatial row tiling over OH: bounds the f32 acc / out tiles and adds a
    # parallel grid axis (v7x TensorCore sharding).
    t_oh = _pick_t_oh(OH, OW, tn)
    if N * J * (OH // t_oh) < 2 and t_oh % 2 == 0:
        t_oh //= 2                              # make >= 2 parallel steps
    R = OH // t_oh
    t_ih = (t_oh - 1) * stride + KH

    # (OC, C, KH, KW) -> (KH, KW, C, OCp), bf16, zero-padded extra OC lanes.
    w = jnp.transpose(weight, (2, 3, 1, 0)).astype(jnp.bfloat16)
    if OCp != OC:
        w = jnp.pad(w, ((0, 0), (0, 0), (0, 0), (0, OCp - OC)))

    kernel = _make_conv_kernel(KH, KW, OH, OW, stride, t_oh)
    grid = (N, J, R)                            # all axes independent/parallel

    # Scoped-VMEM budget from the actual tiles (double-buffered inputs/outputs
    # plus the accumulator and in-kernel shifted-window temporaries).
    cpad = _round_up(C, LANE)
    est = (2 * Hp * _round_up(Wp, 8) * cpad * 2                    # x block
           + 2 * KH * KW * _round_up(C, 8) * tn * 2                # weights
           + 2 * t_oh * _round_up(OW, 8) * tn * 4                  # out tile
           + _round_up(t_oh * OW, 8) * tn * 4                      # acc
           + (KW + 2) * t_ih * _round_up(OW, 8) * cpad * 2)        # temps
    vmem_limit = int(min(max(est * 1.4, 32 * 2**20), 100 * 2**20))

    out = pl.pallas_call(
        kernel,
        out_shape=jax.ShapeDtypeStruct((N, OH, OW, OCp), out_dtype),
        grid=grid,
        in_specs=[
            # Full padded image; index map ignores (j, r) -> resident in VMEM,
            # DMA'd once per batch element.
            pl.BlockSpec((1, Hp, Wp, C), lambda n, j, r: (n, 0, 0, 0)),
            # Weights; constant index map when J == 1 -> never re-DMA'd.
            pl.BlockSpec((KH, KW, C, tn), lambda n, j, r: (0, 0, 0, j)),
        ],
        out_specs=pl.BlockSpec((1, t_oh, OW, tn), lambda n, j, r: (n, r, 0, j)),
        scratch_shapes=[pltpu.VMEM((t_oh * OW, tn), jnp.float32)],
        compiler_params=pltpu.CompilerParams(
            dimension_semantics=("parallel", "parallel", "parallel"),
            vmem_limit_bytes=vmem_limit),
    )(xp, w)

    return out[..., :OC]                        # drop OC padding


# ----------------------------------------------------------------------------
# Full BinConv2d forward (wrapper glue: layout only)
# ----------------------------------------------------------------------------
def bin_conv2d_forward(x_nchw, gamma, beta, weight, *, stride, padding):
    N, C, H, W = x_nchw.shape
    OC, IC, KH, KW = weight.shape
    assert IC == C

    # NCHW -> NHWC (channels on the lane axis)
    x = jnp.transpose(x_nchw, (0, 2, 3, 1))

    # BN + binarize + ConstantPad2d(-1), fused (Pallas kernel 1), bf16 output
    xp = bn_binact_pad(x, gamma, beta, padding)

    # Conv with in-VMEM shifted-window matmuls (Pallas kernel 2)
    y = conv2d_pallas(xp, weight, stride=stride)      # (N, OH, OW, OC) f32
    return jnp.transpose(y, (0, 3, 1, 2))             # back to NCHW


# ----------------------------------------------------------------------------
# Pure-JAX reference (for sanity check)
# ----------------------------------------------------------------------------
def reference_forward(x_nchw, gamma, beta, weight, *, stride, padding):
    mean = jnp.mean(x_nchw, axis=(0, 2, 3), keepdims=True)
    var = jnp.mean((x_nchw - mean) ** 2, axis=(0, 2, 3), keepdims=True)
    y = (x_nchw - mean) * lax.rsqrt(var + BN_EPS)
    y = y * gamma.reshape(1, -1, 1, 1) + beta.reshape(1, -1, 1, 1)
    y = jnp.round(jnp.clip(y, 0.0, 1.0)) * 2.0 - 1.0
    y = jnp.pad(y, ((0, 0), (0, 0), (padding, padding), (padding, padding)),
                constant_values=-1.0)
    return lax.conv_general_dilated(
        y, weight, window_strides=(stride, stride), padding="VALID",
        dimension_numbers=("NCHW", "OIHW", "NCHW"),
        precision=lax.Precision.HIGHEST)


if __name__ == "__main__":
    # BinConv2d(input_channels=4, output_channels=8, kernel_size=3,
    #           stride=1, padding=1)
    N, C, H, W = 2, 4, 16, 16
    OC, KH, KW = 8, 3, 3
    stride, padding = 1, 1

    key = jax.random.PRNGKey(0)
    kx, kg, kb, kw = jax.random.split(key, 4)
    x = jax.random.normal(kx, (N, C, H, W), dtype=jnp.float32)
    gamma = 1.0 + 0.1 * jax.random.normal(kg, (C,), dtype=jnp.float32)
    beta = 0.1 * jax.random.normal(kb, (C,), dtype=jnp.float32)
    fan_in = C * KH * KW
    weight = jax.random.normal(kw, (OC, C, KH, KW), dtype=jnp.float32) / jnp.sqrt(fan_in)

    out = bin_conv2d_forward(x, gamma, beta, weight, stride=stride, padding=padding)
    out = jax.block_until_ready(out)
    assert out.shape == (N, OC, H, W), out.shape

    ref = jax.block_until_ready(
        reference_forward(x, gamma, beta, weight, stride=stride, padding=padding))
    assert bool(jnp.all(jnp.isfinite(out)))
    assert bool(jnp.allclose(out, ref, atol=5e-2, rtol=5e-2)), (
        float(jnp.max(jnp.abs(out - ref))))

    print("KERNEL_OK")
</pallas_src>

<mosaic_0001>
module attributes {stable_mosaic.version = 11 : i64} {
  func.func @kernel(%arg0: i32, %arg1: memref<1x16x16x4xf32, #tpu.memory_space<vmem>>, %arg2: memref<1x1x1x4xf32, #tpu.memory_space<vmem>>, %arg3: memref<1x1x1x4xf32, #tpu.memory_space<vmem>>, %arg4: memref<1x18x18x4xbf16, #tpu.memory_space<vmem>>) attributes {dimension_semantics = [#tpu.dimension_semantics<parallel>], iteration_bounds = array<i64: 2>, scalar_prefetch = 0 : i64, scratch_operands = 0 : i64, tpu.core_type = #tpu.core_type<tc>, window_params = [{transform_indices = @transform_0, window_bounds = array<i64: 1, 16, 16, 4>}, {pipeline_mode = #tpu.pipeline_mode<synchronous>, transform_indices = @transform_1, window_bounds = array<i64: 1, 1, 1, 4>}, {pipeline_mode = #tpu.pipeline_mode<synchronous>, transform_indices = @transform_2, window_bounds = array<i64: 1, 1, 1, 4>}, {transform_indices = @transform_3, window_bounds = array<i64: 1, 18, 18, 4>}]} {
    %c0 = arith.constant 0 : index
    %c0_0 = arith.constant 0 : index
    %c0_1 = arith.constant 0 : index
    %c0_2 = arith.constant 0 : index
    %0 = vector.load %arg1[%c0, %c0_0, %c0_1, %c0_2] : memref<1x16x16x4xf32, #tpu.memory_space<vmem>>, vector<1x16x16x4xf32>
    %c0_3 = arith.constant 0 : index
    %c0_4 = arith.constant 0 : index
    %c0_5 = arith.constant 0 : index
    %c0_6 = arith.constant 0 : index
    %1 = vector.load %arg2[%c0_3, %c0_4, %c0_5, %c0_6] : memref<1x1x1x4xf32, #tpu.memory_space<vmem>>, vector<1x1x1x4xf32>
    %2 = vector.broadcast %1 : vector<1x1x1x4xf32> to vector<1x16x16x4xf32>
    %3 = arith.mulf %0, %2 : vector<1x16x16x4xf32>
    %c0_7 = arith.constant 0 : index
    %c0_8 = arith.constant 0 : index
    %c0_9 = arith.constant 0 : index
    %c0_10 = arith.constant 0 : index
    %4 = vector.load %arg3[%c0_7, %c0_8, %c0_9, %c0_10] : memref<1x1x1x4xf32, #tpu.memory_space<vmem>>, vector<1x1x1x4xf32>
    %5 = vector.broadcast %4 : vector<1x1x1x4xf32> to vector<1x16x16x4xf32>
    %6 = arith.addf %3, %5 : vector<1x16x16x4xf32>
    %cst = arith.constant 5.000000e-01 : f32
    %7 = vector.broadcast %cst : f32 to vector<1x16x16x4xf32>
    %8 = arith.cmpf ogt, %6, %7 : vector<1x16x16x4xf32>
    %cst_11 = arith.constant 1.000000e+00 : f32
    %cst_12 = arith.constant -1.000000e+00 : f32
    %9 = vector.broadcast %cst_11 : f32 to vector<1x16x16x4xf32>
    %10 = vector.broadcast %cst_12 : f32 to vector<1x16x16x4xf32>
    %11 = arith.select %8, %9, %10 : vector<1x16x16x4xi1>, vector<1x16x16x4xf32>
    %12 = arith.truncf %11 : vector<1x16x16x4xf32> to vector<1x16x16x4xbf16>
    %cst_13 = arith.constant -1.000000e+00 : bf16
    %13 = vector.broadcast %cst_13 : bf16 to vector<1x18x18x4xbf16>
    %c0_14 = arith.constant 0 : index
    %c0_15 = arith.constant 0 : index
    %c0_16 = arith.constant 0 : index
    %c0_17 = arith.constant 0 : index
    %14 = vector.load %arg4[%c0_14, %c0_15, %c0_16, %c0_17] : memref<1x18x18x4xbf16, #tpu.memory_space<vmem>>, vector<1x18x18x4xbf16>
    tpu.vector_store %arg4[%c0_14, %c0_15, %c0_16, %c0_17], %13 {strides = array<i32>} : memref<1x18x18x4xbf16, #tpu.memory_space<vmem>>, vector<1x18x18x4xbf16>,
    %15 = vector.shape_cast %12 : vector<1x16x16x4xbf16> to vector<16x16x4xbf16>
    %c0_18 = arith.constant 0 : index
    %c1 = arith.constant 1 : index
    %c1_19 = arith.constant 1 : index
    %c0_20 = arith.constant 0 : index
    %16 = vector.load %arg4[%c0_18, %c1, %c1_19, %c0_20] : memref<1x18x18x4xbf16, #tpu.memory_space<vmem>>, vector<1x16x16x4xbf16>
    %17 = vector.shape_cast %16 : vector<1x16x16x4xbf16> to vector<16x16x4xbf16>
    %18 = vector.shape_cast %15 : vector<16x16x4xbf16> to vector<1x16x16x4xbf16>
    tpu.vector_store %arg4[%c0_18, %c1, %c1_19, %c0_20], %18 {strides = array<i32>} : memref<1x18x18x4xbf16, #tpu.memory_space<vmem>>, vector<1x16x16x4xbf16>,
    return
  }
  func.func @transform_0(%arg0: i32) -> (i32, i32, i32, i32) {
    %c0_i32 = arith.constant 0 : i32
    %c0_i32_0 = arith.constant 0 : i32
    %c0_i32_1 = arith.constant 0 : i32
    %c0_i32_2 = arith.constant 0 : i32
    return %arg0, %c0_i32, %c0_i32_0, %c0_i32_1 : i32, i32, i32, i32
  }
  func.func @transform_1(%arg0: i32) -> (i32, i32, i32, i32) {
    %c0_i32 = arith.constant 0 : i32
    %c0_i32_0 = arith.constant 0 : i32
    %c0_i32_1 = arith.constant 0 : i32
    %c0_i32_2 = arith.constant 0 : i32
    %c0_i32_3 = arith.constant 0 : i32
    return %c0_i32, %c0_i32_0, %c0_i32_1, %c0_i32_2 : i32, i32, i32, i32
  }
  func.func @transform_2(%arg0: i32) -> (i32, i32, i32, i32) {
    %c0_i32 = arith.constant 0 : i32
    %c0_i32_0 = arith.constant 0 : i32
    %c0_i32_1 = arith.constant 0 : i32
    %c0_i32_2 = arith.constant 0 : i32
    %c0_i32_3 = arith.constant 0 : i32
    return %c0_i32, %c0_i32_0, %c0_i32_1, %c0_i32_2 : i32, i32, i32, i32
  }
  func.func @transform_3(%arg0: i32) -> (i32, i32, i32, i32) {
    %c0_i32 = arith.constant 0 : i32
    %c0_i32_0 = arith.constant 0 : i32
    %c0_i32_1 = arith.constant 0 : i32
    %c0_i32_2 = arith.constant 0 : i32
    return %arg0, %c0_i32, %c0_i32_0, %c0_i32_1 : i32, i32, i32, i32
  }
}

</mosaic_0001>

<llo_original>
// kernel: tpu_custom_call.1
$region0: #{tpu_custom_call.1}
  #allocation0 [shape = 'u32[]', space=smem, size = 0x4, offset = 0x4, fixed_abs, tag = 'smem constant byte address 0x4 - core index']
  #allocation1 [shape = 'u32[144,128]{1,0:T(1,128)}', space=vmem, size = 0x12000, scoped, tag = 'internal scratch']
  %s0 = inlined_call_operand.vmem [shape: f32[2,16,16,4], index: 0, kind: input, shape index: {}]
  %s1 = inlined_call_operand.vmem [shape: f32[1,1,1,4], index: 1, kind: input, shape index: {}]
  %s2 = inlined_call_operand.vmem [shape: f32[1,1,1,4], index: 2, kind: input, shape index: {}]
  %s3 = inlined_call_operand.vmem [shape: bf16[2,18,18,4], index: 3, kind: output, shape index: {}]
  %s4 = sld [smem:[#allocation0]]
  $region45: #{tpu_custom_call.1} parent=0
    _
  %s6 = ssub.s32 1, %s4
  %s7 = scalar_select 0, %s6, %s4
  loop: start=0, step=1, limit=4
  $region2: #{tpu_custom_call.1} parent=0 // loop_pre_header
    _
  $region3: #{tpu_custom_call.1} parent=0 // loop_header
    %s9 = sphi 0, %s13
    %p10 = scmp.ge.s32.totalorder %s9, 4
    %s19 = sphi 0, %s21
    %s22 = sphi 0, %s19
    %s23 = sphi 0, %s22
    %s39 = sphi 0, %s23
    %s43 = sphi 0, %s43
    %s45 = sphi 0, %s43
    %s46 = sphi 0, %s45
    %s60 = sphi 0, %s46
    %s64 = sphi 0, %s64
    %s66 = sphi 0, %s64
    %s67 = sphi 0, %s66
    %s81 = sphi 0, %s67
    %s87 = sphi 0, %s89
    %s90 = sphi 0, %s87
    %s91 = sphi 0, %s90
    %s107 = sphi 0, %s91
  $region4: #{tpu_custom_call.1} parent=0 // loop_header_branch
    %12 = sbr.rel (%p10) target = $region8
  $region5: #{tpu_custom_call.1} parent=0 // loop_body
    %s14 = ssub.s32 %s9, 1
    %s15 = ssub.s32 %s9, 2
    %s16 = sadd.s32 %s9, 1
    %s17 = ssub.s32 %s9, %s16
    %p18 = scmp.eq.s32.totalorder %s17, 0
    %s20 = sadd.s32 %s19, 1
    %s21 = scalar_select %p18, %s19, %s20
    %p24 = pneg %p18
    %p25 = scmp.eq.s32.totalorder %s9, 1
    %p26 = por %p24, %p25
    %p27 = scmp.ne.s32.totalorder %s19, %s22
    %p28 = scmp.eq.s32.totalorder %s9, 0
    %p29 = por %p27, %p28
    %p30 = scmp.ne.s32.totalorder %s19, %s22
    %p31 = scmp.eq.s32.totalorder %s14, 1
    %p32 = por %p30, %p31
    %p33 = scmp.ne.s32.totalorder %s22, %s23
    %p34 = scmp.eq.s32.totalorder %s14, 0
    %p35 = por %p33, %p34
    %p36 = scmp.ne.s32.totalorder %s22, %s23
    %p37 = scmp.eq.s32.totalorder %s15, 1
    %p38 = por %p36, %p37
    %p40 = scmp.ne.s32.totalorder %s23, %s39
    %p41 = scmp.eq.s32.totalorder %s15, 0
    %p42 = por %p40, %p41
    %s44 = sadd.s32 %s43, 1
    %p47 = scmp.eq.s32.totalorder %s9, 1
    %p48 = scmp.ne.s32.totalorder %s43, %s45
    %p49 = scmp.eq.s32.totalorder %s9, 0
    %p50 = por %p48, %p49
    %p51 = scmp.ne.s32.totalorder %s43, %s45
    %p52 = scmp.eq.s32.totalorder %s14, 1
    %p53 = por %p51, %p52
    %p54 = scmp.ne.s32.totalorder %s45, %s46
    %p55 = scmp.eq.s32.totalorder %s14, 0
    %p56 = por %p54, %p55
    %p57 = scmp.ne.s32.totalorder %s45, %s46
    %p58 = scmp.eq.s32.totalorder %s15, 1
    %p59 = por %p57, %p58
    %p61 = scmp.ne.s32.totalorder %s46, %s60
    %p62 = scmp.eq.s32.totalorder %s15, 0
    %p63 = por %p61, %p62
    %s65 = sadd.s32 %s64, 1
    %p68 = scmp.eq.s32.totalorder %s9, 1
    %p69 = scmp.ne.s32.totalorder %s64, %s66
    %p70 = scmp.eq.s32.totalorder %s9, 0
    %p71 = por %p69, %p70
    %p72 = scmp.ne.s32.totalorder %s64, %s66
    %p73 = scmp.eq.s32.totalorder %s14, 1
    %p74 = por %p72, %p73
    %p75 = scmp.ne.s32.totalorder %s66, %s67
    %p76 = scmp.eq.s32.totalorder %s14, 0
    %p77 = por %p75, %p76
    %p78 = scmp.ne.s32.totalorder %s66, %s67
    %p79 = scmp.eq.s32.totalorder %s15, 1
    %p80 = por %p78, %p79
    %p82 = scmp.ne.s32.totalorder %s67, %s81
    %p83 = scmp.eq.s32.totalorder %s15, 0
    %p84 = por %p82, %p83
    %s85 = ssub.s32 %s9, %s16
    %p86 = scmp.eq.s32.totalorder %s85, 0
    %s88 = sadd.s32 %s87, 1
    %s89 = scalar_select %p86, %s87, %s88
    %p92 = pneg %p86
    %p93 = scmp.eq.s32.totalorder %s9, 1
    %p94 = por %p92, %p93
    %p95 = scmp.ne.s32.totalorder %s87, %s90
    %p96 = scmp.eq.s32.totalorder %s9, 0
    %p97 = por %p95, %p96
    %p98 = scmp.ne.s32.totalorder %s87, %s90
    %p99 = scmp.eq.s32.totalorder %s14, 1
    %p100 = por %p98, %p99
    %p101 = scmp.ne.s32.totalorder %s90, %s91
    %p102 = scmp.eq.s32.totalorder %s14, 0
    %p103 = por %p101, %p102
    %p104 = scmp.ne.s32.totalorder %s90, %s91
    %p105 = scmp.eq.s32.totalorder %s15, 1
    %p106 = por %p104, %p105
    %p108 = scmp.ne.s32.totalorder %s91, %s107
    %p109 = scmp.eq.s32.totalorder %s15, 0
    %p110 = por %p108, %p109
    %p111 = scmp.le.s32.totalorder 1, %s9
    %p112 = scmp.lt.s32.totalorder %s9, 3
    %p113 = pnand %p111, %p112
    %p114 = pneg %p113
    // Predicated region
    $region9: #{tpu_custom_call.1} parent=5 // pred_check
      _
    $region10: #{tpu_custom_call.1} parent=5 // pred_check_branch
      %116 = sbr.rel (%p113) target = $region12
    $region11: #{tpu_custom_call.1} parent=5 // pred_region
      %s117 = ssub.s32 %s9, 1
      // Predicated region
      $region13: #{tpu_custom_call.1} parent=11 // pred_check
        %p118 = pneg %p56
      $region14: #{tpu_custom_call.1} parent=11 // pred_check_branch
        %120 = sbr.rel (%p118) target = $region16
      $region15: #{tpu_custom_call.1} parent=11 // pred_region
        _
      $region16: #{tpu_custom_call.1} parent=11 // pred_fallthru
        _
      // Predicated region
      $region17: #{tpu_custom_call.1} parent=11 // pred_check
        %p121 = pneg %p77
      $region18: #{tpu_custom_call.1} parent=11 // pred_check_branch
        %123 = sbr.rel (%p121) target = $region20
      $region19: #{tpu_custom_call.1} parent=11 // pred_region
        _
      $region20: #{tpu_custom_call.1} parent=11 // pred_fallthru
        _
    $region12: #{tpu_custom_call.1} parent=5 // pred_fallthru
      _
    %p124 = scmp.lt.s32.totalorder %s9, 2
    // Predicated region
    $region21: #{tpu_custom_call.1} parent=5 // pred_check
      %p125 = pneg %p124
    $region22: #{tpu_custom_call.1} parent=5 // pred_check_branch
      %127 = sbr.rel (%p125) target = $region24
    $region23: #{tpu_custom_call.1} parent=5 // pred_region
      // Predicated region
      $region25: #{tpu_custom_call.1} parent=23 // pred_check
        %p128 = pneg %p29
      $region26: #{tpu_custom_call.1} parent=23 // pred_check_branch
        %130 = sbr.rel (%p128) target = $region28
      $region27: #{tpu_custom_call.1} parent=23 // pred_region
        %p131 = scmp.lt.s32.totalorder %s9, 1
        %s132 = scalar_select %p131, %s9, 1
        %s133 = smul.addr %s132, 32
        %s134 = smul.addr %s133, 8
        %s135 = scalar_lea.vmem %s0, %s134
      $region28: #{tpu_custom_call.1} parent=23 // pred_fallthru
        _
    $region24: #{tpu_custom_call.1} parent=5 // pred_fallthru
      _
    %p136 = scmp.le.s32.totalorder 1, %s9
    %p137 = scmp.lt.s32.totalorder %s9, 3
    %p138 = pnand %p136, %p137
    %p139 = pneg %p138
    // Predicated region
    $region29: #{tpu_custom_call.1} parent=5 // pred_check
      _
    $region30: #{tpu_custom_call.1} parent=5 // pred_check_branch
      %141 = sbr.rel (%p138) target = $region32
    $region31: #{tpu_custom_call.1} parent=5 // pred_region
      %s142 = ssub.s32 %s9, 1
      %p143 = scmp.lt.s32.totalorder %s14, 1
      %s144 = scalar_select %p143, %s14, 1
      %s145 = smul.addr %s144, 32
      %s146 = smul.addr %s145, 8
      %s147 = scalar_lea.vmem %s0, %s146
      %p148 = pneg %p35
      %p149 = pneg %p32
      %p150 = pneg %p56
      %p151 = pneg %p53
      %p152 = pneg %p77
      %p153 = pneg %p74
      %p154 = pneg %p103
      %p155 = pneg %p100
      %p156 = scmp.lt.s32.totalorder %s14, 1
      %s157 = scalar_select %p156, %s14, 1
      %s158 = smul.addr %s157, 54
      %s159 = smul.addr %s158, 4
      %s160 = scalar_lea.vmem %s3, %s159
      %p161 = scmp.lt.s32.totalorder %s14, 1
      %s162 = scalar_select %p161, %s14, 1
      %s163 = smul.addr %s162, 32
      %s164 = smul.addr %s163, 8
      %s165 = scalar_lea.vmem %s0, %s164
      %p166 = scmp.lt.s32.totalorder %s14, 1
      %s167 = scalar_select %p166, %s14, 1
      %s168 = smul.addr %s167, 54
      %s169 = smul.addr %s168, 4
      %s170 = scalar_lea.vmem %s3, %s169
      %v172 = vld [vmem:[%s165] sm:$0xff]
      %v173 = vld [vmem:[%s165 + $0x8] sm:$0xff]
      %v174 = vld [vmem:[%s165 + $0x10] sm:$0xff]
      %v175 = vld [vmem:[%s165 + $0x18] sm:$0xff]
      %v176 = vld [vmem:[%s165 + $0x20] sm:$0xff]
      %v177 = vld [vmem:[%s165 + $0x28] sm:$0xff]
      %v178 = vld [vmem:[%s165 + $0x30] sm:$0xff]
      %v179 = vld [vmem:[%s165 + $0x38] sm:$0xff]
      %v180 = vld [vmem:[%s165 + $0x40] sm:$0xff]
      %v181 = vld [vmem:[%s165 + $0x48] sm:$0xff]
      %v182 = vld [vmem:[%s165 + $0x50] sm:$0xff]
      %v183 = vld [vmem:[%s165 + $0x58] sm:$0xff]
      %v184 = vld [vmem:[%s165 + $0x60] sm:$0xff]
      %v185 = vld [vmem:[%s165 + $0x68] sm:$0xff]
      %v186 = vld [vmem:[%s165 + $0x70] sm:$0xff]
      %v187 = vld [vmem:[%s165 + $0x78] sm:$0xff]
      %v188 = vld [vmem:[%s165 + $0x80] sm:$0xff]
      %v189 = vld [vmem:[%s165 + $0x88] sm:$0xff]
      %v190 = vld [vmem:[%s165 + $0x90] sm:$0xff]
      %v191 = vld [vmem:[%s165 + $0x98] sm:$0xff]
      %v192 = vld [vmem:[%s165 + $0xa0] sm:$0xff]
      %v193 = vld [vmem:[%s165 + $0xa8] sm:$0xff]
      %v194 = vld [vmem:[%s165 + $0xb0] sm:$0xff]
      %v195 = vld [vmem:[%s165 + $0xb8] sm:$0xff]
      %v196 = vld [vmem:[%s165 + $0xc0] sm:$0xff]
      %v197 = vld [vmem:[%s165 + $0xc8] sm:$0xff]
      %v198 = vld [vmem:[%s165 + $0xd0] sm:$0xff]
      %v199 = vld [vmem:[%s165 + $0xd8] sm:$0xff]
      %v200 = vld [vmem:[%s165 + $0xe0] sm:$0xff]
      %v201 = vld [vmem:[%s165 + $0xe8] sm:$0xff]
      %v202 = vld [vmem:[%s165 + $0xf0] sm:$0xff]
      %v203 = vld [vmem:[%s165 + $0xf8] sm:$0xff]
      %v204 = vld [vmem:[%s1] sm:$0x1]
      %v206 = vlaneseq
      %v207 = vshrl.u32 %v206, 7
      %v208 = vsub.s32 0, %v207
      %v209 = vrot.slane %v204, %v208
      %v211 = vmul.f32 %v172, %v209
      %v212 = vmul.f32 %v173, %v209
      %v213 = vmul.f32 %v174, %v209
      %v214 = vmul.f32 %v175, %v209
      %v215 = vmul.f32 %v176, %v209
      %v216 = vmul.f32 %v177, %v209
      %v217 = vmul.f32 %v178, %v209
      %v218 = vmul.f32 %v179, %v209
      %v219 = vmul.f32 %v180, %v209
      %v220 = vmul.f32 %v181, %v209
      %v221 = vmul.f32 %v182, %v209
      %v222 = vmul.f32 %v183, %v209
      %v223 = vmul.f32 %v184, %v209
      %v224 = vmul.f32 %v185, %v209
      %v225 = vmul.f32 %v186, %v209
      %v226 = vmul.f32 %v187, %v209
      %v227 = vmul.f32 %v188, %v209
      %v228 = vmul.f32 %v189, %v209
      %v229 = vmul.f32 %v190, %v209
      %v230 = vmul.f32 %v191, %v209
      %v231 = vmul.f32 %v192, %v209
      %v232 = vmul.f32 %v193, %v209
      %v233 = vmul.f32 %v194, %v209
      %v234 = vmul.f32 %v195, %v209
      %v235 = vmul.f32 %v196, %v209
      %v236 = vmul.f32 %v197, %v209
      %v237 = vmul.f32 %v198, %v209
      %v238 = vmul.f32 %v199, %v209
      %v239 = vmul.f32 %v200, %v209
      %v240 = vmul.f32 %v201, %v209
      %v241 = vmul.f32 %v202, %v209
      %v242 = vmul.f32 %v203, %v209
      %v243 = vld [vmem:[%s2] sm:$0x1]
      %v245 = vlaneseq
      %v246 = vshrl.u32 %v245, 7
      %v247 = vsub.s32 0, %v246
      %v248 = vrot.slane %v243, %v247
      %v250 = vadd.f32 %v211, %v248
      %v251 = vadd.f32 %v212, %v248
      %v252 = vadd.f32 %v213, %v248
      %v253 = vadd.f32 %v214, %v248
      %v254 = vadd.f32 %v215, %v248
      %v255 = vadd.f32 %v216, %v248
      %v256 = vadd.f32 %v217, %v248
      %v257 = vadd.f32 %v218, %v248
      %v258 = vadd.f32 %v219, %v248
      %v259 = vadd.f32 %v220, %v248
      %v260 = vadd.f32 %v221, %v248
      %v261 = vadd.f32 %v222, %v248
      %v262 = vadd.f32 %v223, %v248
      %v263 = vadd.f32 %v224, %v248
      %v264 = vadd.f32 %v225, %v248
      %v265 = vadd.f32 %v226, %v248
      %v266 = vadd.f32 %v227, %v248
      %v267 = vadd.f32 %v228, %v248
      %v268 = vadd.f32 %v229, %v248
      %v269 = vadd.f32 %v230, %v248
      %v270 = vadd.f32 %v231, %v248
      %v271 = vadd.f32 %v232, %v248
      %v272 = vadd.f32 %v233, %v248
      %v273 = vadd.f32 %v234, %v248
      %v274 = vadd.f32 %v235, %v248
      %v275 = vadd.f32 %v236, %v248
      %v276 = vadd.f32 %v237, %v248
      %v277 = vadd.f32 %v238, %v248
      %v278 = vadd.f32 %v239, %v248
      %v279 = vadd.f32 %v240, %v248
      %v280 = vadd.f32 %v241, %v248
      %v281 = vadd.f32 %v242, %v248
      %vm282 = vcmp.gt.f32.partialorder %v250, 0.5
      %vm283 = vcmp.gt.f32.partialorder %v251, 0.5
      %vm284 = vcmp.gt.f32.partialorder %v252, 0.5
      %vm285 = vcmp.gt.f32.partialorder %v253, 0.5
      %vm286 = vcmp.gt.f32.partialorder %v254, 0.5
      %vm287 = vcmp.gt.f32.partialorder %v255, 0.5
      %vm288 = vcmp.gt.f32.partialorder %v256, 0.5
      %vm289 = vcmp.gt.f32.partialorder %v257, 0.5
      %vm290 = vcmp.gt.f32.partialorder %v258, 0.5
      %vm291 = vcmp.gt.f32.partialorder %v259, 0.5
      %vm292 = vcmp.gt.f32.partialorder %v260, 0.5
      %vm293 = vcmp.gt.f32.partialorder %v261, 0.5
      %vm294 = vcmp.gt.f32.partialorder %v262, 0.5
      %vm295 = vcmp.gt.f32.partialorder %v263, 0.5
      %vm296 = vcmp.gt.f32.partialorder %v264, 0.5
      %vm297 = vcmp.gt.f32.partialorder %v265, 0.5
      %vm298 = vcmp.gt.f32.partialorder %v266, 0.5
      %vm299 = vcmp.gt.f32.partialorder %v267, 0.5
      %vm300 = vcmp.gt.f32.partialorder %v268, 0.5
      %vm301 = vcmp.gt.f32.partialorder %v269, 0.5
      %vm302 = vcmp.gt.f32.partialorder %v270, 0.5
      %vm303 = vcmp.gt.f32.partialorder %v271, 0.5
      %vm304 = vcmp.gt.f32.partialorder %v272, 0.5
      %vm305 = vcmp.gt.f32.partialorder %v273, 0.5
      %vm306 = vcmp.gt.f32.partialorder %v274, 0.5
      %vm307 = vcmp.gt.f32.partialorder %v275, 0.5
      %vm308 = vcmp.gt.f32.partialorder %v276, 0.5
      %vm309 = vcmp.gt.f32.partialorder %v277, 0.5
      %vm310 = vcmp.gt.f32.partialorder %v278, 0.5
      %vm311 = vcmp.gt.f32.partialorder %v279, 0.5
      %vm312 = vcmp.gt.f32.partialorder %v280, 0.5
      %vm313 = vcmp.gt.f32.partialorder %v281, 0.5
      %v314 = vsel %vm282, 1.0, -1.0
      %v315 = vsel %vm283, 1.0, -1.0
      %v316 = vsel %vm284, 1.0, -1.0
      %v317 = vsel %vm285, 1.0, -1.0
      %v318 = vsel %vm286, 1.0, -1.0
      %v319 = vsel %vm287, 1.0, -1.0
      %v320 = vsel %vm288, 1.0, -1.0
      %v321 = vsel %vm289, 1.0, -1.0
      %v322 = vsel %vm290, 1.0, -1.0
      %v323 = vsel %vm291, 1.0, -1.0
      %v324 = vsel %vm292, 1.0, -1.0
      %v325 = vsel %vm293, 1.0, -1.0
      %v326 = vsel %vm294, 1.0, -1.0
      %v327 = vsel %vm295, 1.0, -1.0
      %v328 = vsel %vm296, 1.0, -1.0
      %v329 = vsel %vm297, 1.0, -1.0
      %v330 = vsel %vm298, 1.0, -1.0
      %v331 = vsel %vm299, 1.0, -1.0
      %v332 = vsel %vm300, 1.0, -1.0
      %v333 = vsel %vm301, 1.0, -1.0
      %v334 = vsel %vm302, 1.0, -1.0
      %v335 = vsel %vm303, 1.0, -1.0
      %v336 = vsel %vm304, 1.0, -1.0
      %v337 = vsel %vm305, 1.0, -1.0
      %v338 = vsel %vm306, 1.0, -1.0
      %v339 = vsel %vm307, 1.0, -1.0
      %v340 = vsel %vm308, 1.0, -1.0
      %v341 = vsel %vm309, 1.0, -1.0
      %v342 = vsel %vm310, 1.0, -1.0
      %v343 = vsel %vm311, 1.0, -1.0
      %v344 = vsel %vm312, 1.0, -1.0
      %v345 = vsel %vm313, 1.0, -1.0
      %v346 = vpack.c.bf16 %v315, %v314
      %v347 = vpack.c.bf16 %v317, %v316
      %v348 = vpack.c.bf16 %v319, %v318
      %v349 = vpack.c.bf16 %v321, %v320
      %v350 = vpack.c.bf16 %v323, %v322
      %v351 = vpack.c.bf16 %v325, %v324
      %v352 = vpack.c.bf16 %v327, %v326
      %v353 = vpack.c.bf16 %v329, %v328
      %v354 = vpack.c.bf16 %v331, %v330
      %v355 = vpack.c.bf16 %v333, %v332
      %v356 = vpack.c.bf16 %v335, %v334
      %v357 = vpack.c.bf16 %v337, %v336
      %v358 = vpack.c.bf16 %v339, %v338
      %v359 = vpack.c.bf16 %v341, %v340
      %v360 = vpack.c.bf16 %v343, %v342
      %v361 = vpack.c.bf16 %v345, %v344
      %vm362 = vcmask 27648
      %363 = vst.msk [vmem:[%s170] sm:$0xf] %vm362, 3212885888
      %364 = vst.msk [vmem:[%s170 + $0x4] sm:$0xf] %vm362, 3212885888
      %vm365 = vcmask 24576
      %366 = vst.msk [vmem:[%s170 + $0x8] sm:$0x1] %vm365, 3212885888
      %367 = vst.msk [vmem:[%s170 + $0xc] sm:$0xf] %vm362, 3212885888
      %368 = vst.msk [vmem:[%s170 + $0x10] sm:$0xf] %vm362, 3212885888
      %369 = vst.msk [vmem:[%s170 + $0x14] sm:$0x1] %vm365, 3212885888
      %370 = vst.msk [vmem:[%s170 + $0x18] sm:$0xf] %vm362, 3212885888
      %371 = vst.msk [vmem:[%s170 + $0x1c] sm:$0xf] %vm362, 3212885888
      %372 = vst.msk [vmem:[%s170 + $0x20] sm:$0x1] %vm365, 3212885888
      %373 = vst.msk [vmem:[%s170 + $0x24] sm:$0xf] %vm362, 3212885888
      %374 = vst.msk [vmem:[%s170 + $0x28] sm:$0xf] %vm362, 3212885888
      %375 = vst.msk [vmem:[%s170 + $0x2c] sm:$0x1] %vm365, 3212885888
      %376 = vst.msk [vmem:[%s170 + $0x30] sm:$0xf] %vm362, 3212885888
      %377 = vst.msk [vmem:[%s170 + $0x34] sm:$0xf] %vm362, 3212885888
      %378 = vst.msk [vmem:[%s170 + $0x38] sm:$0x1] %vm365, 3212885888
      %379 = vst.msk [vmem:[%s170 + $0x3c] sm:$0xf] %vm362, 3212885888
      %380 = vst.msk [vmem:[%s170 + $0x40] sm:$0xf] %vm362, 3212885888
      %381 = vst.msk [vmem:[%s170 + $0x44] sm:$0x1] %vm365, 3212885888
      %382 = vst.msk [vmem:[%s170 + $0x48] sm:$0xf] %vm362, 3212885888
      %383 = vst.msk [vmem:[%s170 + $0x4c] sm:$0xf] %vm362, 3212885888
      %384 = vst.msk [vmem:[%s170 + $0x50] sm:$0x1] %vm365, 3212885888
      %385 = vst.msk [vmem:[%s170 + $0x54] sm:$0xf] %vm362, 3212885888
      %386 = vst.msk [vmem:[%s170 + $0x58] sm:$0xf] %vm362, 3212885888
      %387 = vst.msk [vmem:[%s170 + $0x5c] sm:$0x1] %vm365, 3212885888
      %388 = vst.msk [vmem:[%s170 + $0x60] sm:$0xf] %vm362, 3212885888
      %389 = vst.msk [vmem:[%s170 + $0x64] sm:$0xf] %vm362, 3212885888
      %390 = vst.msk [vmem:[%s170 + $0x68] sm:$0x1] %vm365, 3212885888
      %391 = vst.msk [vmem:[%s170 + $0x6c] sm:$0xf] %vm362, 3212885888
      %392 = vst.msk [vmem:[%s170 + $0x70] sm:$0xf] %vm362, 3212885888
      %393 = vst.msk [vmem:[%s170 + $0x74] sm:$0x1] %vm365, 3212885888
      %394 = vst.msk [vmem:[%s170 + $0x78] sm:$0xf] %vm362, 3212885888
      %395 = vst.msk [vmem:[%s170 + $0x7c] sm:$0xf] %vm362, 3212885888
      %396 = vst.msk [vmem:[%s170 + $0x80] sm:$0x1] %vm365, 3212885888
      %397 = vst.msk [vmem:[%s170 + $0x84] sm:$0xf] %vm362, 3212885888
      %398 = vst.msk [vmem:[%s170 + $0x88] sm:$0xf] %vm362, 3212885888
      %399 = vst.msk [vmem:[%s170 + $0x8c] sm:$0x1] %vm365, 3212885888
      %400 = vst.msk [vmem:[%s170 + $0x90] sm:$0xf] %vm362, 3212885888
      %401 = vst.msk [vmem:[%s170 + $0x94] sm:$0xf] %vm362, 3212885888
      %402 = vst.msk [vmem:[%s170 + $0x98] sm:$0x1] %vm365, 3212885888
      %403 = vst.msk [vmem:[%s170 + $0x9c] sm:$0xf] %vm362, 3212885888
      %404 = vst.msk [vmem:[%s170 + $0xa0] sm:$0xf] %vm362, 3212885888
      %405 = vst.msk [vmem:[%s170 + $0xa4] sm:$0x1] %vm365, 3212885888
      %406 = vst.msk [vmem:[%s170 + $0xa8] sm:$0xf] %vm362, 3212885888
      %407 = vst.msk [vmem:[%s170 + $0xac] sm:$0xf] %vm362, 3212885888
      %408 = vst.msk [vmem:[%s170 + $0xb0] sm:$0x1] %vm365, 3212885888
      %409 = vst.msk [vmem:[%s170 + $0xb4] sm:$0xf] %vm362, 3212885888
      %410 = vst.msk [vmem:[%s170 + $0xb8] sm:$0xf] %vm362, 3212885888
      %411 = vst.msk [vmem:[%s170 + $0xbc] sm:$0x1] %vm365, 3212885888
      %412 = vst.msk [vmem:[%s170 + $0xc0] sm:$0xf] %vm362, 3212885888
      %413 = vst.msk [vmem:[%s170 + $0xc4] sm:$0xf] %vm362, 3212885888
      %414 = vst.msk [vmem:[%s170 + $0xc8] sm:$0x1] %vm365, 3212885888
      %415 = vst.msk [vmem:[%s170 + $0xcc] sm:$0xf] %vm362, 3212885888
      %416 = vst.msk [vmem:[%s170 + $0xd0] sm:$0xf] %vm362, 3212885888
      %417 = vst.msk [vmem:[%s170 + $0xd4] sm:$0x1] %vm365, 3212885888
      %v434 = vunpack.c.l.b16 %v346
      %v435 = vunpack.c.h.b16 %v346
      %v436 = vunpack.c.l.b16 %v347
      %v437 = vunpack.c.h.b16 %v347
      %v438 = vunpack.c.l.b16 %v348
      %v439 = vunpack.c.h.b16 %v348
      %v440 = vunpack.c.l.b16 %v349
      %v441 = vunpack.c.h.b16 %v349
      %v442 = vunpack.c.l.b16 %v350
      %v443 = vunpack.c.h.b16 %v350
      %v444 = vunpack.c.l.b16 %v351
      %v445 = vunpack.c.h.b16 %v351
      %v446 = vunpack.c.l.b16 %v352
      %v447 = vunpack.c.h.b16 %v352
      %v448 = vunpack.c.l.b16 %v353
      %v449 = vunpack.c.h.b16 %v353
      %v450 = vunpack.c.l.b16 %v354
      %v451 = vunpack.c.h.b16 %v354
      %v452 = vunpack.c.l.b16 %v355
      %v453 = vunpack.c.h.b16 %v355
      %v454 = vunpack.c.l.b16 %v356
      %v455 = vunpack.c.h.b16 %v356
      %v456 = vunpack.c.l.b16 %v357
      %v457 = vunpack.c.h.b16 %v357
      %v458 = vunpack.c.l.b16 %v358
      %v459 = vunpack.c.h.b16 %v358
      %v460 = vunpack.c.l.b16 %v359
      %v461 = vunpack.c.h.b16 %v359
      %v462 = vunpack.c.l.b16 %v360
      %v463 = vunpack.c.h.b16 %v360
      %v464 = vunpack.c.l.b16 %v361
      %v465 = vunpack.c.h.b16 %v361
      %v466 = vpack.c.b16 %v434, %v434
      %v467 = vpack.c.b16 %v435, %v435
      %v468 = vpack.c.b16 %v436, %v436
      %v469 = vpack.c.b16 %v437, %v437
      %v470 = vpack.c.b16 %v438, %v438
      %v471 = vpack.c.b16 %v439, %v439
      %v472 = vpack.c.b16 %v440, %v440
      %v473 = vpack.c.b16 %v441, %v441
      %v474 = vpack.c.b16 %v442, %v442
      %v475 = vpack.c.b16 %v443, %v443
      %v476 = vpack.c.b16 %v444, %v444
      %v477 = vpack.c.b16 %v445, %v445
      %v478 = vpack.c.b16 %v446, %v446
      %v479 = vpack.c.b16 %v447, %v447
      %v480 = vpack.c.b16 %v448, %v448
      %v481 = vpack.c.b16 %v449, %v449
      %v482 = vpack.c.b16 %v450, %v450
      %v483 = vpack.c.b16 %v451, %v451
      %v484 = vpack.c.b16 %v452, %v452
      %v485 = vpack.c.b16 %v453, %v453
      %v486 = vpack.c.b16 %v454, %v454
      %v487 = vpack.c.b16 %v455, %v455
      %v488 = vpack.c.b16 %v456, %v456
      %v489 = vpack.c.b16 %v457, %v457
      %v490 = vpack.c.b16 %v458, %v458
      %v491 = vpack.c.b16 %v459, %v459
      %v492 = vpack.c.b16 %v460, %v460
      %v493 = vpack.c.b16 %v461, %v461
      %v494 = vpack.c.b16 %v462, %v462
      %v495 = vpack.c.b16 %v463, %v463
      %v496 = vpack.c.b16 %v464, %v464
      %v497 = vpack.c.b16 %v465, %v465
      %vm498 = vsmask.f32 256
      %vm499 = vsmask.f32 4368
      %vm500 = vmor %vm498, %vm499
      %v502 = vshrl.u32 %v466, 16
      %v504 = vrot.slane %v502, 7
      %v505 = vshll.u32 %v466, 16
      %v507 = vor.u32 %v504, %v505
      %v508 = vrot.slane %v504, 4
      %v510 = vshrl.u32 %v467, 16
      %v512 = vrot.slane %v510, 7
      %v513 = vshll.u32 %v467, 16
      %v515 = vor.u32 %v512, %v513
      %v516 = vsel %vm500, %v508, %v515
      %v517 = vrot.slane %v512, 4
      %v519 = vshrl.u32 %v468, 16
      %v521 = vrot.slane %v519, 7
      %v522 = vshll.u32 %v468, 16
      %v524 = vor.u32 %v521, %v522
      %v525 = vrot.slane %v521, 4
      %v527 = vshrl.u32 %v469, 16
      %v529 = vrot.slane %v527, 7
      %v530 = vshll.u32 %v469, 16
      %v532 = vor.u32 %v529, %v530
      %v533 = vsel %vm500, %v525, %v532
      %v534 = vrot.slane %v529, 4
      %v536 = vshrl.u32 %v470, 16
      %v538 = vrot.slane %v536, 7
      %v539 = vshll.u32 %v470, 16
      %v541 = vor.u32 %v538, %v539
      %v542 = vrot.slane %v538, 4
      %v544 = vshrl.u32 %v471, 16
      %v546 = vrot.slane %v544, 7
      %v547 = vshll.u32 %v471, 16
      %v549 = vor.u32 %v546, %v547
      %v550 = vsel %vm500, %v542, %v549
      %v551 = vrot.slane %v546, 4
      %v553 = vshrl.u32 %v472, 16
      %v555 = vrot.slane %v553, 7
      %v556 = vshll.u32 %v472, 16
      %v558 = vor.u32 %v555, %v556
      %v559 = vrot.slane %v555, 4
      %v561 = vshrl.u32 %v473, 16
      %v563 = vrot.slane %v561, 7
      %v564 = vshll.u32 %v473, 16
      %v566 = vor.u32 %v563, %v564
      %v567 = vsel %vm500, %v559, %v566
      %v568 = vrot.slane %v563, 4
      %v570 = vshrl.u32 %v474, 16
      %v572 = vrot.slane %v570, 7
      %v573 = vshll.u32 %v474, 16
      %v575 = vor.u32 %v572, %v573
      %v576 = vrot.slane %v572, 4
      %v578 = vshrl.u32 %v475, 16
      %v580 = vrot.slane %v578, 7
      %v581 = vshll.u32 %v475, 16
      %v583 = vor.u32 %v580, %v581
      %v584 = vsel %vm500, %v576, %v583
      %v585 = vrot.slane %v580, 4
      %v587 = vshrl.u32 %v476, 16
      %v589 = vrot.slane %v587, 7
      %v590 = vshll.u32 %v476, 16
      %v592 = vor.u32 %v589, %v590
      %v593 = vrot.slane %v589, 4
      %v595 = vshrl.u32 %v477, 16
      %v597 = vrot.slane %v595, 7
      %v598 = vshll.u32 %v477, 16
      %v600 = vor.u32 %v597, %v598
      %v601 = vsel %vm500, %v593, %v600
      %v602 = vrot.slane %v597, 4
      %v604 = vshrl.u32 %v478, 16
      %v606 = vrot.slane %v604, 7
      %v607 = vshll.u32 %v478, 16
      %v609 = vor.u32 %v606, %v607
      %v610 = vrot.slane %v606, 4
      %v612 = vshrl.u32 %v479, 16
      %v614 = vrot.slane %v612, 7
      %v615 = vshll.u32 %v479, 16
      %v617 = vor.u32 %v614, %v615
      %v618 = vsel %vm500, %v610, %v617
      %v619 = vrot.slane %v614, 4
      %v621 = vshrl.u32 %v480, 16
      %v623 = vrot.slane %v621, 7
      %v624 = vshll.u32 %v480, 16
      %v626 = vor.u32 %v623, %v624
      %v627 = vrot.slane %v623, 4
      %v629 = vshrl.u32 %v481, 16
      %v631 = vrot.slane %v629, 7
      %v632 = vshll.u32 %v481, 16
      %v634 = vor.u32 %v631, %v632
      %v635 = vsel %vm500, %v627, %v634
      %v636 = vrot.slane %v631, 4
      %v638 = vshrl.u32 %v482, 16
      %v640 = vrot.slane %v638, 7
      %v641 = vshll.u32 %v482, 16
      %v643 = vor.u32 %v640, %v641
      %v644 = vrot.slane %v640, 4
      %v646 = vshrl.u32 %v483, 16
      %v648 = vrot.slane %v646, 7
      %v649 = vshll.u32 %v483, 16
      %v651 = vor.u32 %v648, %v649
      %v652 = vsel %vm500, %v644, %v651
      %v653 = vrot.slane %v648, 4
      %v655 = vshrl.u32 %v484, 16
      %v657 = vrot.slane %v655, 7
      %v658 = vshll.u32 %v484, 16
      %v660 = vor.u32 %v657, %v658
      %v661 = vrot.slane %v657, 4
      %v663 = vshrl.u32 %v485, 16
      %v665 = vrot.slane %v663, 7
      %v666 = vshll.u32 %v485, 16
      %v668 = vor.u32 %v665, %v666
      %v669 = vsel %vm500, %v661, %v668
      %v670 = vrot.slane %v665, 4
      %v672 = vshrl.u32 %v486, 16
      %v674 = vrot.slane %v672, 7
      %v675 = vshll.u32 %v486, 16
      %v677 = vor.u32 %v674, %v675
      %v678 = vrot.slane %v674, 4
      %v680 = vshrl.u32 %v487, 16
      %v682 = vrot.slane %v680, 7
      %v683 = vshll.u32 %v487, 16
      %v685 = vor.u32 %v682, %v683
      %v686 = vsel %vm500, %v678, %v685
      %v687 = vrot.slane %v682, 4
      %v689 = vshrl.u32 %v488, 16
      %v691 = vrot.slane %v689, 7
      %v692 = vshll.u32 %v488, 16
      %v694 = vor.u32 %v691, %v692
      %v695 = vrot.slane %v691, 4
      %v697 = vshrl.u32 %v489, 16
      %v699 = vrot.slane %v697, 7
      %v700 = vshll.u32 %v489, 16
      %v702 = vor.u32 %v699, %v700
      %v703 = vsel %vm500, %v695, %v702
      %v704 = vrot.slane %v699, 4
      %v706 = vshrl.u32 %v490, 16
      %v708 = vrot.slane %v706, 7
      %v709 = vshll.u32 %v490, 16
      %v711 = vor.u32 %v708, %v709
      %v712 = vrot.slane %v708, 4
      %v714 = vshrl.u32 %v491, 16
      %v716 = vrot.slane %v714, 7
      %v717 = vshll.u32 %v491, 16
      %v719 = vor.u32 %v716, %v717
      %v720 = vsel %vm500, %v712, %v719
      %v721 = vrot.slane %v716, 4
      %v723 = vshrl.u32 %v492, 16
      %v725 = vrot.slane %v723, 7
      %v726 = vshll.u32 %v492, 16
      %v728 = vor.u32 %v725, %v726
      %v729 = vrot.slane %v725, 4
      %v731 = vshrl.u32 %v493, 16
      %v733 = vrot.slane %v731, 7
      %v734 = vshll.u32 %v493, 16
      %v736 = vor.u32 %v733, %v734
      %v737 = vsel %vm500, %v729, %v736
      %v738 = vrot.slane %v733, 4
      %v740 = vshrl.u32 %v494, 16
      %v742 = vrot.slane %v740, 7
      %v743 = vshll.u32 %v494, 16
      %v745 = vor.u32 %v742, %v743
      %v746 = vrot.slane %v742, 4
      %v748 = vshrl.u32 %v495, 16
      %v750 = vrot.slane %v748, 7
      %v751 = vshll.u32 %v495, 16
      %v753 = vor.u32 %v750, %v751
      %v754 = vsel %vm500, %v746, %v753
      %v755 = vrot.slane %v750, 4
      %v757 = vshrl.u32 %v496, 16
      %v759 = vrot.slane %v757, 7
      %v760 = vshll.u32 %v496, 16
      %v762 = vor.u32 %v759, %v760
      %v763 = vrot.slane %v759, 4
      %v765 = vshrl.u32 %v497, 16
      %v767 = vrot.slane %v765, 7
      %v768 = vshll.u32 %v497, 16
      %v770 = vor.u32 %v767, %v768
      %v771 = vsel %vm500, %v763, %v770
      %v772 = vrot.slane %v767, 4
      %s821 = scalar_lea.vmem %s170, 12
      %vm822 = vcmask 27648
      %vm823 = vsmask.f32 7938
      %vm824 = vmand %vm822, %vm823
      %v825 = vld [vmem:[%s821] sm:$0xf]
      %v826 = vsel %vm824, %v507, %v825
      %827 = vst [vmem:[%s821] sm:$0xf] %v826
      %828 = vst.msk [vmem:[%s821 + $0x4] sm:$0xf] %vm362, %v516
      %vm829 = vcmask 24576
      %vm830 = vmand %vm829, %vm498
      %v831 = vld [vmem:[%s821 + $0x8] sm:$0x1]
      %v832 = vsel %vm830, %v517, %v831
      %833 = vst [vmem:[%s821 + $0x8] sm:$0x1] %v832
      %v834 = vld [vmem:[%s821 + $0xc] sm:$0xf]
      %v835 = vsel %vm824, %v524, %v834
      %836 = vst [vmem:[%s821 + $0xc] sm:$0xf] %v835
      %837 = vst.msk [vmem:[%s821 + $0x10] sm:$0xf] %vm362, %v533
      %v838 = vld [vmem:[%s821 + $0x14] sm:$0x1]
      %v839 = vsel %vm830, %v534, %v838
      %840 = vst [vmem:[%s821 + $0x14] sm:$0x1] %v839
      %v841 = vld [vmem:[%s821 + $0x18] sm:$0xf]
      %v842 = vsel %vm824, %v541, %v841
      %843 = vst [vmem:[%s821 + $0x18] sm:$0xf] %v842
      %844 = vst.msk [vmem:[%s821 + $0x1c] sm:$0xf] %vm362, %v550
      %v845 = vld [vmem:[%s821 + $0x20] sm:$0x1]
      %v846 = vsel %vm830, %v551, %v845
      %847 = vst [vmem:[%s821 + $0x20] sm:$0x1] %v846
      %v848 = vld [vmem:[%s821 + $0x24] sm:$0xf]
      %v849 = vsel %vm824, %v558, %v848
      %850 = vst [vmem:[%s821 + $0x24] sm:$0xf] %v849
      %851 = vst.msk [vmem:[%s821 + $0x28] sm:$0xf] %vm362, %v567
      %v852 = vld [vmem:[%s821 + $0x2c] sm:$0x1]
      %v853 = vsel %vm830, %v568, %v852
      %854 = vst [vmem:[%s821 + $0x2c] sm:$0x1] %v853
      %v855 = vld [vmem:[%s821 + $0x30] sm:$0xf]
      %v856 = vsel %vm824, %v575, %v855
      %857 = vst [vmem:[%s821 + $0x30] sm:$0xf] %v856
      %858 = vst.msk [vmem:[%s821 + $0x34] sm:$0xf] %vm362, %v584
      %v859 = vld [vmem:[%s821 + $0x38] sm:$0x1]
      %v860 = vsel %vm830, %v585, %v859
      %861 = vst [vmem:[%s821 + $0x38] sm:$0x1] %v860
      %v862 = vld [vmem:[%s821 + $0x3c] sm:$0xf]
      %v863 = vsel %vm824, %v592, %v862
      %864 = vst [vmem:[%s821 + $0x3c] sm:$0xf] %v863
      %865 = vst.msk [vmem:[%s821 + $0x40] sm:$0xf] %vm362, %v601
      %v866 = vld [vmem:[%s821 + $0x44] sm:$0x1]
      %v867 = vsel %vm830, %v602, %v866
      %868 = vst [vmem:[%s821 + $0x44] sm:$0x1] %v867
      %v869 = vld [vmem:[%s821 + $0x48] sm:$0xf]
      %v870 = vsel %vm824, %v609, %v869
      %871 = vst [vmem:[%s821 + $0x48] sm:$0xf] %v870
      %872 = vst.msk [vmem:[%s821 + $0x4c] sm:$0xf] %vm362, %v618
      %v873 = vld [vmem:[%s821 + $0x50] sm:$0x1]
      %v874 = vsel %vm830, %v619, %v873
      %875 = vst [vmem:[%s821 + $0x50] sm:$0x1] %v874
      %v876 = vld [vmem:[%s821 + $0x54] sm:$0xf]
      %v877 = vsel %vm824, %v626, %v876
      %878 = vst [vmem:[%s821 + $0x54] sm:$0xf] %v877
      %879 = vst.msk [vmem:[%s821 + $0x58] sm:$0xf] %vm362, %v635
      %v880 = vld [vmem:[%s821 + $0x5c] sm:$0x1]
      %v881 = vsel %vm830, %v636, %v880
      %882 = vst [vmem:[%s821 + $0x5c] sm:$0x1] %v881
      %v883 = vld [vmem:[%s821 + $0x60] sm:$0xf]
      %v884 = vsel %vm824, %v643, %v883
      %885 = vst [vmem:[%s821 + $0x60] sm:$0xf] %v884
      %886 = vst.msk [vmem:[%s821 + $0x64] sm:$0xf] %vm362, %v652
      %v887 = vld [vmem:[%s821 + $0x68] sm:$0x1]
      %v888 = vsel %vm830, %v653, %v887
      %889 = vst [vmem:[%s821 + $0x68] sm:$0x1] %v888
      %v890 = vld [vmem:[%s821 + $0x6c] sm:$0xf]
      %v891 = vsel %vm824, %v660, %v890
      %892 = vst [vmem:[%s821 + $0x6c] sm:$0xf] %v891
      %893 = vst.msk [vmem:[%s821 + $0x70] sm:$0xf] %vm362, %v669
      %v894 = vld [vmem:[%s821 + $0x74] sm:$0x1]
      %v895 = vsel %vm830, %v670, %v894
      %896 = vst [vmem:[%s821 + $0x74] sm:$0x1] %v895
      %v897 = vld [vmem:[%s821 + $0x78] sm:$0xf]
      %v898 = vsel %vm824, %v677, %v897
      %899 = vst [vmem:[%s821 + $0x78] sm:$0xf] %v898
      %900 = vst.msk [vmem:[%s821 + $0x7c] sm:$0xf] %vm362, %v686
      %v901 = vld [vmem:[%s821 + $0x80] sm:$0x1]
      %v902 = vsel %vm830, %v687, %v901
      %903 = vst [vmem:[%s821 + $0x80] sm:$0x1] %v902
      %v904 = vld [vmem:[%s821 + $0x84] sm:$0xf]
      %v905 = vsel %vm824, %v694, %v904
      %906 = vst [vmem:[%s821 + $0x84] sm:$0xf] %v905
      %907 = vst.msk [vmem:[%s821 + $0x88] sm:$0xf] %vm362, %v703
      %v908 = vld [vmem:[%s821 + $0x8c] sm:$0x1]
      %v909 = vsel %vm830, %v704, %v908
      %910 = vst [vmem:[%s821 + $0x8c] sm:$0x1] %v909
      %v911 = vld [vmem:[%s821 + $0x90] sm:$0xf]
      %v912 = vsel %vm824, %v711, %v911
      %913 = vst [vmem:[%s821 + $0x90] sm:$0xf] %v912
      %914 = vst.msk [vmem:[%s821 + $0x94] sm:$0xf] %vm362, %v720
      %v915 = vld [vmem:[%s821 + $0x98] sm:$0x1]
      %v916 = vsel %vm830, %v721, %v915
      %917 = vst [vmem:[%s821 + $0x98] sm:$0x1] %v916
      %v918 = vld [vmem:[%s821 + $0x9c] sm:$0xf]
      %v919 = vsel %vm824, %v728, %v918
      %920 = vst [vmem:[%s821 + $0x9c] sm:$0xf] %v919
      %921 = vst.msk [vmem:[%s821 + $0xa0] sm:$0xf] %vm362, %v737
      %v922 = vld [vmem:[%s821 + $0xa4] sm:$0x1]
      %v923 = vsel %vm830, %v738, %v922
      %924 = vst [vmem:[%s821 + $0xa4] sm:$0x1] %v923
      %v925 = vld [vmem:[%s821 + $0xa8] sm:$0xf]
      %v926 = vsel %vm824, %v745, %v925
      %927 = vst [vmem:[%s821 + $0xa8] sm:$0xf] %v926
      %928 = vst.msk [vmem:[%s821 + $0xac] sm:$0xf] %vm362, %v754
      %v929 = vld [vmem:[%s821 + $0xb0] sm:$0x1]
      %v930 = vsel %vm830, %v755, %v929
      %931 = vst [vmem:[%s821 + $0xb0] sm:$0x1] %v930
      %v932 = vld [vmem:[%s821 + $0xb4] sm:$0xf]
      %v933 = vsel %vm824, %v762, %v932
      %934 = vst [vmem:[%s821 + $0xb4] sm:$0xf] %v933
      %935 = vst.msk [vmem:[%s821 + $0xb8] sm:$0xf] %vm362, %v771
      %v936 = vld [vmem:[%s821 + $0xbc] sm:$0x1]
      %v937 = vsel %vm830, %v772, %v936
      %938 = vst [vmem:[%s821 + $0xbc] sm:$0x1] %v937
      %p939 = scmp.lt.s32.totalorder %s14, 1
      %s940 = scalar_select %p939, %s14, 1
      %s941 = smul.addr %s940, 54
      %s942 = smul.addr %s941, 4
      %s943 = scalar_lea.vmem %s3, %s942
      // Predicated region
      $region33: #{tpu_custom_call.1} parent=31 // pred_check
        %p944 = pneg %p100
      $region34: #{tpu_custom_call.1} parent=31 // pred_check_branch
        %946 = sbr.rel (%p944) target = $region36
      $region35: #{tpu_custom_call.1} parent=31 // pred_region
        _
      $region36: #{tpu_custom_call.1} parent=31 // pred_fallthru
        _
    $region32: #{tpu_custom_call.1} parent=5 // pred_fallthru
      _
    %p947 = scmp.le.s32.totalorder 2, %s9
    // Predicated region
    $region37: #{tpu_custom_call.1} parent=5 // pred_check
      %p948 = pneg %p947
    $region38: #{tpu_custom_call.1} parent=5 // pred_check_branch
      %950 = sbr.rel (%p948) target = $region40
    $region39: #{tpu_custom_call.1} parent=5 // pred_region
      %s951 = ssub.s32 %s9, 2
      // Predicated region
      $region41: #{tpu_custom_call.1} parent=39 // pred_check
        %p952 = pneg %p106
      $region42: #{tpu_custom_call.1} parent=39 // pred_check_branch
        %954 = sbr.rel (%p952) target = $region44
      $region43: #{tpu_custom_call.1} parent=39 // pred_region
        %p955 = scmp.lt.s32.totalorder %s15, 1
        %s956 = scalar_select %p955, %s15, 1
        %s957 = smul.addr %s956, 54
        %s958 = smul.addr %s957, 4
        %s959 = scalar_lea.vmem %s3, %s958
      $region44: #{tpu_custom_call.1} parent=39 // pred_fallthru
        _
    $region40: #{tpu_custom_call.1} parent=5 // pred_fallthru
      _
  $region6: #{tpu_custom_call.1} parent=0 // loop_footer
    %s13 = sadd.s32 1, %s9
  $region7: #{tpu_custom_call.1} parent=0 // loop_footer_branch
    %8 = sbr.rel target = $region3
  $region8: #{tpu_custom_call.1} parent=0 // loop_exit
    _

</llo_original>
